<compile_context>
chip_gen: v7x
topology: tpu7x:2x2x1
jax: 0.10.0
libtpu: 0.0.40
codegen_flags: <defaults>
</compile_context>

<pallas_src>
import functools

import jax
import jax.numpy as jnp
from jax.experimental import pallas as pl
from jax.experimental.pallas import tpu as pltpu

_LANE_WIDTHS = (1024, 512, 256, 128)          # widest lane-dense layout that divides n
_TARGET_BLOCK_BYTES = 2 * 1024 * 1024         # ~2 MiB per buffer (safe for v7x VMEM)


def _quant_kernel(x_ref, o_ref, *, levels: float, compute_dtype):
    # Pure VPU elementwise quantization. jnp.round matches torch.round
    # (round-half-to-even). Divide (not mul-by-reciprocal) for exact parity.
    x = x_ref[...].astype(compute_dtype)
    q = jnp.round(x * levels) / levels
    o_ref[...] = q.astype(o_ref.dtype)


def _quant_slab(slab: jax.Array, levels: float) -> jax.Array:
    rows, width = slab.shape
    itemsize = jnp.dtype(slab.dtype).itemsize

    # ~2 MiB blocks, rows a multiple of 8 (sublane alignment); full extent if small.
    target_rows = max(8, (_TARGET_BLOCK_BYTES // (width * itemsize)) // 8 * 8)
    block_rows = rows if target_rows >= rows else target_rows
    grid = (pl.cdiv(rows, block_rows),)

    # Promote sub-32-bit dtypes (bf16/f16/int8) to f32 for the arithmetic.
    compute_dtype = jnp.float32 if itemsize < 4 else slab.dtype

    return pl.pallas_call(
        functools.partial(_quant_kernel, levels=levels, compute_dtype=compute_dtype),
        out_shape=jax.ShapeDtypeStruct((rows, width), slab.dtype),
        grid=grid,
        in_specs=[pl.BlockSpec((block_rows, width), lambda i: (i, 0))],
        out_specs=pl.BlockSpec((block_rows, width), lambda i: (i, 0)),
        compiler_params=pltpu.CompilerParams(
            dimension_semantics=("parallel",),   # lets v7x shard the grid across both TCs
        ),
    )(slab)


def quant(x: jax.Array, num_bits: int) -> jax.Array:
    """Quantize `x` to `num_bits` levels, exactly like the torch Quant module."""
    levels = float(2 ** num_bits - 1)
    orig_shape = x.shape
    n = x.size
    flat = x.reshape(-1)

    # Pick the widest lane count that divides n -> zero-copy slab layout.
    width = None
    for w in _LANE_WIDTHS:
        if n % w == 0:
            width = w
            break

    padded = False
    if width is None:
        # Ragged fallback (rare): pad tail to a multiple of 128, slice after.
        width = 128
        pad = (-n) % width
        flat = jnp.concatenate([flat, jnp.zeros((pad,), dtype=flat.dtype)])
        padded = True

    slab = flat.reshape(-1, width)
    out = _quant_slab(slab, levels)

    if padded:
        return out.reshape(-1)[:n].reshape(orig_shape)
    return out.reshape(orig_shape)


if __name__ == "__main__":
    num_bits = 4  # Quant has no weights; num_bits is the module "parameter"

    key = jax.random.PRNGKey(0)
    x = jax.random.uniform(key, (2, 4, 16, 16), dtype=jnp.float32)  # NCHW

    y = quant(x, num_bits)
    y = jax.block_until_ready(y)

    # Reference check in plain JAX.
    levels = float(2 ** num_bits - 1)
    y_ref = jnp.round(x * levels) / levels
    assert y.shape == x.shape and y.dtype == x.dtype
    assert jnp.allclose(y, y_ref, atol=1e-6), "mismatch vs reference"

    print("KERNEL_OK")
</pallas_src>

<mosaic_0001>
module attributes {stable_mosaic.version = 11 : i64} {
  func.func @_quant_kernel(%arg0: i32, %arg1: memref<2x1024xf32, #tpu.memory_space<vmem>>, %arg2: memref<2x1024xf32, #tpu.memory_space<vmem>>) attributes {dimension_semantics = [#tpu.dimension_semantics<parallel>], iteration_bounds = array<i64: 1>, scalar_prefetch = 0 : i64, scratch_operands = 0 : i64, tpu.core_type = #tpu.core_type<tc>, window_params = [{transform_indices = @transform_0, window_bounds = array<i64: 2, 1024>}, {transform_indices = @transform_1, window_bounds = array<i64: 2, 1024>}]} {
    %c0 = arith.constant 0 : index
    %c0_0 = arith.constant 0 : index
    %0 = vector.load %arg1[%c0, %c0_0] : memref<2x1024xf32, #tpu.memory_space<vmem>>, vector<2x1024xf32>
    %cst = arith.constant 1.500000e+01 : f32
    %1 = vector.broadcast %cst : f32 to vector<2x1024xf32>
    %2 = arith.mulf %0, %1 : vector<2x1024xf32>
    %3 = math.roundeven %2 : vector<2x1024xf32>
    %cst_1 = arith.constant 1.500000e+01 : f32
    %4 = vector.broadcast %cst_1 : f32 to vector<2x1024xf32>
    %5 = arith.divf %3, %4 : vector<2x1024xf32>
    %c0_2 = arith.constant 0 : index
    %c0_3 = arith.constant 0 : index
    %6 = vector.load %arg2[%c0_2, %c0_3] : memref<2x1024xf32, #tpu.memory_space<vmem>>, vector<2x1024xf32>
    tpu.vector_store %arg2[%c0_2, %c0_3], %5 {strides = array<i32>} : memref<2x1024xf32, #tpu.memory_space<vmem>>, vector<2x1024xf32>,
    return
  }
  func.func @transform_0(%arg0: i32) -> (i32, i32) {
    %c0_i32 = arith.constant 0 : i32
    %c0_i32_0 = arith.constant 0 : i32
    return %arg0, %c0_i32 : i32, i32
  }
  func.func @transform_1(%arg0: i32) -> (i32, i32) {
    %c0_i32 = arith.constant 0 : i32
    %c0_i32_0 = arith.constant 0 : i32
    return %arg0, %c0_i32 : i32, i32
  }
}

</mosaic_0001>

<llo_original>
// kernel: tpu_custom_call.1
$region0: #{tpu_custom_call.1}
  #allocation0 [shape = 'u32[]', space=smem, size = 0x4, offset = 0x4, fixed_abs, tag = 'smem constant byte address 0x4 - core index']
  #allocation1 [shape = 'u32[144,128]{1,0:T(1,128)}', space=vmem, size = 0x12000, scoped, tag = 'internal scratch']
  %s0 = inlined_call_operand.hbm [shape: f32[2,1024], index: 0, kind: input, shape index: {}]
  %s1 = inlined_call_operand.hbm [shape: f32[2,1024], index: 1, kind: output, shape index: {}]
  %s2 = sld [smem:[#allocation0]]
  $region18: #{tpu_custom_call.1} parent=0
    _
  %s4 = ssub.s32 1, %s2
  %s5 = scalar_select 0, %s4, %s2
  $region1: #{tpu_custom_call.1} parent=0
    #allocation2 [shape = 'u8[8192]{0}', space=vmem, size = 0x2000, scoped, tag = 'input window, operand 0, single buffered']
    #allocation3 [shape = 's32[1]{0}', space=sflag, size = 0x4, scoped, tag = 'scoped memory for tpu_custom_call.1']
    #allocation4 [shape = 's32[1]{0}', space=sflag, size = 0x4, scoped, tag = 'scoped memory for tpu_custom_call.1']
    #allocation5 [shape = 'u8[8192]{0}', space=vmem, size = 0x2000, scoped, tag = 'output window, operand 0, single buffered']
    %6 = vsyncpa [#allocation3], 0
    %7 = vsyncpa [#allocation4], 0
    // Predicated region
    $region2: #{tpu_custom_call.1} parent=1 // pred_check
      _
    $region3: #{tpu_custom_call.1} parent=1 // pred_check_branch
      %9 = sbr.rel (0) target = $region5
    $region4: #{tpu_custom_call.1} parent=1 // pred_region
      %s11 = ssub.s32 256, 256
      %12 = vsyncadd [#allocation3], %s11
      %s14 = sshll.u32 [#allocation2], 4
      %s15 = int_to_ptr.vmem [resolvable:$true] %s14
      %17 = dma.hbm_to_vmem [thread:$0]  %s0, 256, %s15, [#allocation3]
    $region5: #{tpu_custom_call.1} parent=1 // pred_fallthru
      _
    // Predicated region
    $region6: #{tpu_custom_call.1} parent=1 // pred_check
      _
    $region7: #{tpu_custom_call.1} parent=1 // pred_check_branch
      %19 = sbr.rel (0) target = $region9
    $region8: #{tpu_custom_call.1} parent=1 // pred_region
      %20 = dma.done [#allocation3], 256
    $region9: #{tpu_custom_call.1} parent=1 // pred_fallthru
      _
    %v21 = vld [vmem:[#allocation2] sm:$0xff]
    %v22 = vld [vmem:[#allocation2 + $0x8] sm:$0xff]
    %v23 = vmul.f32 %v21, 15.0
    %v24 = vmul.f32 %v22, 15.0
    %v25 = vround.ne.pseudo %v23
    %v26 = vround.ne.pseudo %v24
    %v27 = vrcp.pop 15.0
    %v28 = vmul.f32 %v25, %v27
    %v29 = vmul.f32 %v26, %v27
    %30 = vst [vmem:[#allocation5] sm:$0xff] %v28
    %31 = vst [vmem:[#allocation5 + $0x8] sm:$0xff] %v29
    // Predicated region
    $region10: #{tpu_custom_call.1} parent=1 // pred_check
      _
    $region11: #{tpu_custom_call.1} parent=1 // pred_check_branch
      %33 = sbr.rel (0) target = $region13
    $region12: #{tpu_custom_call.1} parent=1 // pred_region
      %s35 = ssub.s32 256, 256
      %36 = vsyncadd [#allocation4], %s35
      %s38 = sshll.u32 [#allocation5], 4
      %s39 = int_to_ptr.vmem [resolvable:$true] %s38
      %41 = dma.vmem_to_hbm [thread:$0]  %s39, 256, %s1, [#allocation4]
    $region13: #{tpu_custom_call.1} parent=1 // pred_fallthru
      _
    // Predicated region
    $region14: #{tpu_custom_call.1} parent=1 // pred_check
      _
    $region15: #{tpu_custom_call.1} parent=1 // pred_check_branch
      %43 = sbr.rel (0) target = $region17
    $region16: #{tpu_custom_call.1} parent=1 // pred_region
      %44 = dma.done [#allocation4], 256
    $region17: #{tpu_custom_call.1} parent=1 // pred_fallthru
      _
    %45 = vsyncpa [#allocation3], 1
    %46 = vsyncpa [#allocation4], 1

</llo_original>
